<compile_context>
chip_gen: v5e
topology: v5e:2x2
jax: 0.10.0
libtpu: 0.0.40
codegen_flags: <defaults>
</compile_context>

<pallas_src>
import functools

import jax
import jax.numpy as jnp
from jax.experimental import pallas as pl
from jax.experimental.pallas import tpu as pltpu


def _conv1d_kernel(x_ref, w_ref, b_ref, o_ref, *, c_in, c_out, ksize,
                   stride, dilation, l_out):
    # x_ref: (1, C_in, S, L_ph)  VMEM -- phase-split padded input, one batch:
    #                                    x_ref[0, c, s, j] == x_padded[c, j*stride + s]
    # w_ref: (C_out, C_in*K)     SMEM -- conv weight, scalar reads
    # b_ref: (1, C_out)          SMEM -- bias, scalar reads
    # o_ref: (1, C_out, L_out)   VMEM -- output block, already NCW
    rows = []
    for co in range(c_out):
        acc = jnp.zeros((1, l_out), dtype=jnp.float32)
        for c in range(c_in):
            for k in range(ksize):
                # input index l*stride + k*dilation  ==  phase r, position l + q
                q, r = divmod(k * dilation, stride)
                tap = x_ref[0, c, r:r + 1, q:q + l_out].astype(jnp.float32)  # (1, L_out)
                acc = acc + w_ref[co, c * ksize + k] * tap                   # VPU FMA
        rows.append(acc + b_ref[0, co])
    out = rows[0] if c_out == 1 else jnp.concatenate(rows, axis=0)           # (C_out, L_out)
    o_ref[0] = out.astype(o_ref.dtype)


@functools.partial(jax.jit, static_argnames=("stride", "padding", "dilation"))
def conv1d_pallas(x, weight, bias, *, stride=2, padding=1, dilation=1):
    """1D convolution matching torch.nn.Conv1d (groups=1, zero padding).

    x:      (B, C_in, L)        NCW, like PyTorch
    weight: (C_out, C_in, K)
    bias:   (C_out,)
    returns (B, C_out, L_out)   NCW
    """
    # TODO(synk): groups > 1 and non-'zeros' padding_mode not implemented (not
    # exercised by the module's default configuration).
    B, C_in, L = x.shape
    C_out, _, K = weight.shape
    L_out = (L + 2 * padding - dilation * (K - 1) - 1) // stride + 1

    # --- glue: zero-pad and split the length axis into `stride` phases so that
    # every tap inside the kernel is a contiguous lane slice. This is a single
    # fused XLA pass over x (pad + reshape + transpose), with no duplication.
    L_pad = L + 2 * padding
    L_ph = -(-L_pad // stride)                 # ceil(L_pad / stride)
    extra = L_ph * stride - L_pad
    x_p = jnp.pad(x, ((0, 0), (0, 0), (padding, padding + extra)))
    x_ph = jnp.transpose(x_p.reshape(B, C_in, L_ph, stride), (0, 1, 3, 2))  # (B,C_in,S,L_ph)

    w2 = weight.reshape(C_out, C_in * K).astype(jnp.float32)   # SMEM scalars
    b2 = bias.reshape(1, C_out).astype(jnp.float32)            # SMEM scalars

    kernel = functools.partial(
        _conv1d_kernel, c_in=C_in, c_out=C_out, ksize=K,
        stride=stride, dilation=dilation, l_out=L_out)

    return pl.pallas_call(
        kernel,
        out_shape=jax.ShapeDtypeStruct((B, C_out, L_out), x.dtype),
        grid_spec=pltpu.PrefetchScalarGridSpec(
            num_scalar_prefetch=0,
            grid=(B,),
            in_specs=[
                pl.BlockSpec((1, C_in, stride, L_ph), lambda b: (b, 0, 0, 0)),
                pl.BlockSpec(memory_space=pltpu.MemorySpace.SMEM),
                pl.BlockSpec(memory_space=pltpu.MemorySpace.SMEM),
            ],
            out_specs=pl.BlockSpec((1, C_out, L_out), lambda b: (b, 0, 0)),
        ),
        compiler_params=pltpu.CompilerParams(
            dimension_semantics=("parallel",),
        ),
    )(x_ph, w2, b2)


if __name__ == "__main__":
    # Module defaults: nbr_conv=1, in_channels=2, out_channels=1, kernel_size=3,
    # stride=2, padding=1, dilation=1, groups=1, bias=True, length=8.
    B, C_in, C_out, K, L = 2, 2, 1, 3, 8
    stride, padding, dilation = 2, 1, 1

    key = jax.random.PRNGKey(0)
    kx, kw, kb = jax.random.split(key, 3)

    x = jax.random.normal(kx, (B, C_in, L), dtype=jnp.float32)

    # Deterministic init matching torch.nn.Conv1d's U(-bound, bound), bound=1/sqrt(C_in*K)
    bound = 1.0 / (C_in * K) ** 0.5
    weight = jax.random.uniform(kw, (C_out, C_in, K), jnp.float32, -bound, bound)
    bias = jax.random.uniform(kb, (C_out,), jnp.float32, -bound, bound)

    out = conv1d_pallas(x, weight, bias,
                        stride=stride, padding=padding, dilation=dilation)
    out = jax.block_until_ready(out)

    # Reference check against XLA's conv (same semantics as torch.nn.Conv1d).
    ref = jax.lax.conv_general_dilated(
        x, weight,
        window_strides=(stride,),
        padding=[(padding, padding)],
        rhs_dilation=(dilation,),
        dimension_numbers=("NCH", "OIH", "NCH"),
    ) + bias.reshape(1, C_out, 1)

    L_out = (L + 2 * padding - dilation * (K - 1) - 1) // stride + 1
    assert out.shape == (B, C_out, L_out)
    assert jnp.allclose(out, ref, atol=1e-5, rtol=1e-5), (out, ref)

    print("KERNEL_OK")
</pallas_src>

<mosaic_0001>
module attributes {stable_mosaic.version = 11 : i64} {
  func.func @_conv1d_kernel(%arg0: i32, %arg1: memref<1x2x2x5xf32, #tpu.memory_space<vmem>>, %arg2: memref<1x6xf32, #tpu.memory_space<smem>>, %arg3: memref<1x1xf32, #tpu.memory_space<smem>>, %arg4: memref<1x1x4xf32, #tpu.memory_space<vmem>>) attributes {dimension_semantics = [#tpu.dimension_semantics<parallel>], iteration_bounds = array<i64: 2>, scalar_prefetch = 0 : i64, scratch_operands = 0 : i64, tpu.core_type = #tpu.core_type<tc>, window_params = [{transform_indices = @transform_0, window_bounds = array<i64: 1, 2, 2, 5>}, {transform_indices = @transform_1, window_bounds = array<i64: 1, 6>}, {transform_indices = @transform_2, window_bounds = array<i64: 1, 1>}, {transform_indices = @transform_3, window_bounds = array<i64: 1, 1, 4>}]} {
    %cst = arith.constant 0.000000e+00 : f32
    %0 = vector.broadcast %cst : f32 to vector<1x4xf32>
    %c0 = arith.constant 0 : index
    %c0_0 = arith.constant 0 : index
    %c0_1 = arith.constant 0 : index
    %c0_2 = arith.constant 0 : index
    %1 = vector.load %arg1[%c0, %c0_0, %c0_1, %c0_2] : memref<1x2x2x5xf32, #tpu.memory_space<vmem>>, vector<1x1x1x4xf32>
    %2 = vector.shape_cast %1 : vector<1x1x1x4xf32> to vector<1x4xf32>
    %c0_3 = arith.constant 0 : index
    %c0_4 = arith.constant 0 : index
    %3 = memref.load %arg2[%c0_3, %c0_4] : memref<1x6xf32, #tpu.memory_space<smem>>
    %4 = vector.broadcast %3 : f32 to vector<1x4xf32>
    %5 = arith.mulf %4, %2 : vector<1x4xf32>
    %6 = arith.addf %0, %5 : vector<1x4xf32>
    %c0_5 = arith.constant 0 : index
    %c0_6 = arith.constant 0 : index
    %c1 = arith.constant 1 : index
    %c0_7 = arith.constant 0 : index
    %7 = vector.load %arg1[%c0_5, %c0_6, %c1, %c0_7] : memref<1x2x2x5xf32, #tpu.memory_space<vmem>>, vector<1x1x1x4xf32>
    %8 = vector.shape_cast %7 : vector<1x1x1x4xf32> to vector<1x4xf32>
    %c0_8 = arith.constant 0 : index
    %c1_9 = arith.constant 1 : index
    %9 = memref.load %arg2[%c0_8, %c1_9] : memref<1x6xf32, #tpu.memory_space<smem>>
    %10 = vector.broadcast %9 : f32 to vector<1x4xf32>
    %11 = arith.mulf %10, %8 : vector<1x4xf32>
    %12 = arith.addf %6, %11 : vector<1x4xf32>
    %c0_10 = arith.constant 0 : index
    %c0_11 = arith.constant 0 : index
    %c0_12 = arith.constant 0 : index
    %c1_13 = arith.constant 1 : index
    %13 = vector.load %arg1[%c0_10, %c0_11, %c0_12, %c1_13] : memref<1x2x2x5xf32, #tpu.memory_space<vmem>>, vector<1x1x1x4xf32>
    %14 = vector.shape_cast %13 : vector<1x1x1x4xf32> to vector<1x4xf32>
    %c0_14 = arith.constant 0 : index
    %c2 = arith.constant 2 : index
    %15 = memref.load %arg2[%c0_14, %c2] : memref<1x6xf32, #tpu.memory_space<smem>>
    %16 = vector.broadcast %15 : f32 to vector<1x4xf32>
    %17 = arith.mulf %16, %14 : vector<1x4xf32>
    %18 = arith.addf %12, %17 : vector<1x4xf32>
    %c0_15 = arith.constant 0 : index
    %c1_16 = arith.constant 1 : index
    %c0_17 = arith.constant 0 : index
    %c0_18 = arith.constant 0 : index
    %19 = vector.load %arg1[%c0_15, %c1_16, %c0_17, %c0_18] : memref<1x2x2x5xf32, #tpu.memory_space<vmem>>, vector<1x1x1x4xf32>
    %20 = vector.shape_cast %19 : vector<1x1x1x4xf32> to vector<1x4xf32>
    %c0_19 = arith.constant 0 : index
    %c3 = arith.constant 3 : index
    %21 = memref.load %arg2[%c0_19, %c3] : memref<1x6xf32, #tpu.memory_space<smem>>
    %22 = vector.broadcast %21 : f32 to vector<1x4xf32>
    %23 = arith.mulf %22, %20 : vector<1x4xf32>
    %24 = arith.addf %18, %23 : vector<1x4xf32>
    %c0_20 = arith.constant 0 : index
    %c1_21 = arith.constant 1 : index
    %c1_22 = arith.constant 1 : index
    %c0_23 = arith.constant 0 : index
    %25 = vector.load %arg1[%c0_20, %c1_21, %c1_22, %c0_23] : memref<1x2x2x5xf32, #tpu.memory_space<vmem>>, vector<1x1x1x4xf32>
    %26 = vector.shape_cast %25 : vector<1x1x1x4xf32> to vector<1x4xf32>
    %c0_24 = arith.constant 0 : index
    %c4 = arith.constant 4 : index
    %27 = memref.load %arg2[%c0_24, %c4] : memref<1x6xf32, #tpu.memory_space<smem>>
    %28 = vector.broadcast %27 : f32 to vector<1x4xf32>
    %29 = arith.mulf %28, %26 : vector<1x4xf32>
    %30 = arith.addf %24, %29 : vector<1x4xf32>
    %c0_25 = arith.constant 0 : index
    %c1_26 = arith.constant 1 : index
    %c0_27 = arith.constant 0 : index
    %c1_28 = arith.constant 1 : index
    %31 = vector.load %arg1[%c0_25, %c1_26, %c0_27, %c1_28] : memref<1x2x2x5xf32, #tpu.memory_space<vmem>>, vector<1x1x1x4xf32>
    %32 = vector.shape_cast %31 : vector<1x1x1x4xf32> to vector<1x4xf32>
    %c0_29 = arith.constant 0 : index
    %c5 = arith.constant 5 : index
    %33 = memref.load %arg2[%c0_29, %c5] : memref<1x6xf32, #tpu.memory_space<smem>>
    %34 = vector.broadcast %33 : f32 to vector<1x4xf32>
    %35 = arith.mulf %34, %32 : vector<1x4xf32>
    %36 = arith.addf %30, %35 : vector<1x4xf32>
    %c0_30 = arith.constant 0 : index
    %c0_31 = arith.constant 0 : index
    %37 = memref.load %arg3[%c0_30, %c0_31] : memref<1x1xf32, #tpu.memory_space<smem>>
    %38 = vector.broadcast %37 : f32 to vector<1x4xf32>
    %39 = arith.addf %36, %38 : vector<1x4xf32>
    %c0_32 = arith.constant 0 : index
    %c0_33 = arith.constant 0 : index
    %c0_34 = arith.constant 0 : index
    %40 = vector.load %arg4[%c0_32, %c0_33, %c0_34] : memref<1x1x4xf32, #tpu.memory_space<vmem>>, vector<1x1x4xf32>
    %41 = vector.shape_cast %40 : vector<1x1x4xf32> to vector<1x4xf32>
    %42 = vector.shape_cast %39 : vector<1x4xf32> to vector<1x1x4xf32>
    tpu.vector_store %arg4[%c0_32, %c0_33, %c0_34], %42 {strides = array<i32>} : memref<1x1x4xf32, #tpu.memory_space<vmem>>, vector<1x1x4xf32>,
    return
  }
  func.func @transform_0(%arg0: i32) -> (i32, i32, i32, i32) {
    %c0_i32 = arith.constant 0 : i32
    %c0_i32_0 = arith.constant 0 : i32
    %c0_i32_1 = arith.constant 0 : i32
    %c0_i32_2 = arith.constant 0 : i32
    return %arg0, %c0_i32, %c0_i32_0, %c0_i32_1 : i32, i32, i32, i32
  }
  func.func @transform_1(%arg0: i32) -> (i32, i32) {
    %c0_i32 = arith.constant 0 : i32
    %c0_i32_0 = arith.constant 0 : i32
    %c0_i32_1 = arith.constant 0 : i32
    return %c0_i32, %c0_i32_0 : i32, i32
  }
  func.func @transform_2(%arg0: i32) -> (i32, i32) {
    %c0_i32 = arith.constant 0 : i32
    %c0_i32_0 = arith.constant 0 : i32
    %c0_i32_1 = arith.constant 0 : i32
    return %c0_i32, %c0_i32_0 : i32, i32
  }
  func.func @transform_3(%arg0: i32) -> (i32, i32, i32) {
    %c0_i32 = arith.constant 0 : i32
    %c0_i32_0 = arith.constant 0 : i32
    %c0_i32_1 = arith.constant 0 : i32
    return %arg0, %c0_i32, %c0_i32_0 : i32, i32, i32
  }
}

</mosaic_0001>

<llo_original>
// kernel: conv1d_pallas.1
$region0: #{conv1d_pallas.1}
  #allocation0 [shape = 'u32[]', space=smem, size = 0x4, offset = 0x4, fixed_abs, tag = 'smem constant byte address 0x4 - core index']
  #allocation1 [shape = 'u32[72,128]{1,0:T(1,128)}', space=vmem, size = 0x9000, scoped, tag = 'internal scratch']
  #allocation2 [shape = 'f32[1,1]{1,0:T(1,128)S(6)}', space=smem, size = 0x200, scoped, tag = 'scoped memory for conv1d_pallas.1']
  %s0 = inlined_call_operand.vmem [shape: f32[2,2,2,5], index: 0, kind: input, shape index: {}]
  %s1 = inlined_call_operand.vmem [shape: f32[1,6], index: 1, kind: input, shape index: {}]
  %s2 = inlined_call_operand.<no memory space> [shape: f32[1,1], index: 2, kind: input, shape index: {}]
  %s3 = inlined_call_operand.hbm [shape: f32[2,1,4], index: 3, kind: output, shape index: {}]
  %s4 = sld [smem:[#allocation0]]
  $region49: #{conv1d_pallas.1} parent=0
    _
  %s6 = ssub.s32 1, %s4
  %s7 = scalar_select 0, %s6, %s4
  %8 = sst [smem:[#allocation2]] %s2
  $region1: #{conv1d_pallas.1} parent=0
    #allocation3 [shape = 'u8[512]{0}', space=smem, size = 0x200, scoped, tag = 'input window, operand 1, single buffered']
    #allocation4 [shape = 's32[2]{0}', space=sflag, size = 0x8, scoped, tag = 'scoped memory for conv1d_pallas.1']
    #allocation5 [shape = 's32[2]{0}', space=sflag, size = 0x8, scoped, tag = 'scoped memory for conv1d_pallas.1']
    #allocation6 [shape = 'u8[1024]{0}', space=vmem, size = 0x400, scoped, tag = 'output window, operand 0']
    %9 = vsyncpa [#allocation5], 0
    %10 = vsyncpa [#allocation4], 0
    %s11 = scalar_lea.sflag [#allocation4], 1
    %12 = vsyncpa %s11, 0
    loop: start=0, step=1, limit=4
    $region2: #{conv1d_pallas.1} parent=1 // loop_pre_header
      _
    $region3: #{conv1d_pallas.1} parent=1 // loop_header
      %s14 = sphi 0, %s18
      %p15 = scmp.ge.s32.totalorder %s14, 4
      %s24 = sphi 0, %s26
      %s27 = sphi 0, %s24
      %s28 = sphi 0, %s27
      %s44 = sphi 0, %s28
      %s48 = sphi 0, %s48
      %s50 = sphi 0, %s48
      %s51 = sphi 0, %s50
      %s65 = sphi 0, %s51
      %s69 = sphi 0, %s69
      %s71 = sphi 0, %s69
      %s72 = sphi 0, %s71
      %s86 = sphi 0, %s72
      %s92 = sphi 0, %s94
      %s95 = sphi 0, %s92
      %s96 = sphi 0, %s95
      %s112 = sphi 0, %s96
    $region4: #{conv1d_pallas.1} parent=1 // loop_header_branch
      %17 = sbr.rel (%p15) target = $region8
    $region5: #{conv1d_pallas.1} parent=1 // loop_body
      %s19 = ssub.s32 %s14, 1
      %s20 = ssub.s32 %s14, 2
      %s21 = sadd.s32 %s14, 1
      %s22 = ssub.s32 %s14, %s21
      %p23 = scmp.eq.s32.totalorder %s22, 0
      %s25 = sadd.s32 %s24, 1
      %s26 = scalar_select %p23, %s24, %s25
      %p29 = pneg %p23
      %p30 = scmp.eq.s32.totalorder %s14, 1
      %p31 = por %p29, %p30
      %p32 = scmp.ne.s32.totalorder %s24, %s27
      %p33 = scmp.eq.s32.totalorder %s14, 0
      %p34 = por %p32, %p33
      %p35 = scmp.ne.s32.totalorder %s24, %s27
      %p36 = scmp.eq.s32.totalorder %s19, 1
      %p37 = por %p35, %p36
      %p38 = scmp.ne.s32.totalorder %s27, %s28
      %p39 = scmp.eq.s32.totalorder %s19, 0
      %p40 = por %p38, %p39
      %p41 = scmp.ne.s32.totalorder %s27, %s28
      %p42 = scmp.eq.s32.totalorder %s20, 1
      %p43 = por %p41, %p42
      %p45 = scmp.ne.s32.totalorder %s28, %s44
      %p46 = scmp.eq.s32.totalorder %s20, 0
      %p47 = por %p45, %p46
      %s49 = sadd.s32 %s48, 1
      %p52 = scmp.eq.s32.totalorder %s14, 1
      %p53 = scmp.ne.s32.totalorder %s48, %s50
      %p54 = scmp.eq.s32.totalorder %s14, 0
      %p55 = por %p53, %p54
      %p56 = scmp.ne.s32.totalorder %s48, %s50
      %p57 = scmp.eq.s32.totalorder %s19, 1
      %p58 = por %p56, %p57
      %p59 = scmp.ne.s32.totalorder %s50, %s51
      %p60 = scmp.eq.s32.totalorder %s19, 0
      %p61 = por %p59, %p60
      %p62 = scmp.ne.s32.totalorder %s50, %s51
      %p63 = scmp.eq.s32.totalorder %s20, 1
      %p64 = por %p62, %p63
      %p66 = scmp.ne.s32.totalorder %s51, %s65
      %p67 = scmp.eq.s32.totalorder %s20, 0
      %p68 = por %p66, %p67
      %s70 = sadd.s32 %s69, 1
      %p73 = scmp.eq.s32.totalorder %s14, 1
      %p74 = scmp.ne.s32.totalorder %s69, %s71
      %p75 = scmp.eq.s32.totalorder %s14, 0
      %p76 = por %p74, %p75
      %p77 = scmp.ne.s32.totalorder %s69, %s71
      %p78 = scmp.eq.s32.totalorder %s19, 1
      %p79 = por %p77, %p78
      %p80 = scmp.ne.s32.totalorder %s71, %s72
      %p81 = scmp.eq.s32.totalorder %s19, 0
      %p82 = por %p80, %p81
      %p83 = scmp.ne.s32.totalorder %s71, %s72
      %p84 = scmp.eq.s32.totalorder %s20, 1
      %p85 = por %p83, %p84
      %p87 = scmp.ne.s32.totalorder %s72, %s86
      %p88 = scmp.eq.s32.totalorder %s20, 0
      %p89 = por %p87, %p88
      %s90 = ssub.s32 %s14, %s21
      %p91 = scmp.eq.s32.totalorder %s90, 0
      %s93 = sadd.s32 %s92, 1
      %s94 = scalar_select %p91, %s92, %s93
      %p97 = pneg %p91
      %p98 = scmp.eq.s32.totalorder %s14, 1
      %p99 = por %p97, %p98
      %p100 = scmp.ne.s32.totalorder %s92, %s95
      %p101 = scmp.eq.s32.totalorder %s14, 0
      %p102 = por %p100, %p101
      %p103 = scmp.ne.s32.totalorder %s92, %s95
      %p104 = scmp.eq.s32.totalorder %s19, 1
      %p105 = por %p103, %p104
      %p106 = scmp.ne.s32.totalorder %s95, %s96
      %p107 = scmp.eq.s32.totalorder %s19, 0
      %p108 = por %p106, %p107
      %p109 = scmp.ne.s32.totalorder %s95, %s96
      %p110 = scmp.eq.s32.totalorder %s20, 1
      %p111 = por %p109, %p110
      %p113 = scmp.ne.s32.totalorder %s96, %s112
      %p114 = scmp.eq.s32.totalorder %s20, 0
      %p115 = por %p113, %p114
      %p116 = scmp.le.s32.totalorder 1, %s14
      %p117 = scmp.lt.s32.totalorder %s14, 3
      %p118 = pnand %p116, %p117
      %p119 = pneg %p118
      // Predicated region
      $region9: #{conv1d_pallas.1} parent=5 // pred_check
        _
      $region10: #{conv1d_pallas.1} parent=5 // pred_check_branch
        %121 = sbr.rel (%p118) target = $region12
      $region11: #{conv1d_pallas.1} parent=5 // pred_region
        %s122 = ssub.s32 %s14, 1
        // Predicated region
        $region13: #{conv1d_pallas.1} parent=11 // pred_check
          %p123 = pneg %p61
        $region14: #{conv1d_pallas.1} parent=11 // pred_check_branch
          %125 = sbr.rel (%p123) target = $region16
        $region15: #{conv1d_pallas.1} parent=11 // pred_region
          %127 = vsyncadd [#allocation5], 0
          %s129 = sshll.u32 %s1, 4
          %s130 = int_to_ptr.vmem [resolvable:$true] %s129
          %132 = dma.vmem_to_smem %s130, 16, [#allocation3], [#allocation5]
        $region16: #{conv1d_pallas.1} parent=11 // pred_fallthru
          _
        // Predicated region
        $region17: #{conv1d_pallas.1} parent=11 // pred_check
          %p133 = pneg %p82
        $region18: #{conv1d_pallas.1} parent=11 // pred_check_branch
          %135 = sbr.rel (%p133) target = $region20
        $region19: #{conv1d_pallas.1} parent=11 // pred_region
          _
        $region20: #{conv1d_pallas.1} parent=11 // pred_fallthru
          _
      $region12: #{conv1d_pallas.1} parent=5 // pred_fallthru
        _
      %p136 = scmp.lt.s32.totalorder %s14, 2
      // Predicated region
      $region21: #{conv1d_pallas.1} parent=5 // pred_check
        %p137 = pneg %p136
      $region22: #{conv1d_pallas.1} parent=5 // pred_check_branch
        %139 = sbr.rel (%p137) target = $region24
      $region23: #{conv1d_pallas.1} parent=5 // pred_region
        // Predicated region
        $region25: #{conv1d_pallas.1} parent=23 // pred_check
          %p140 = pneg %p34
        $region26: #{conv1d_pallas.1} parent=23 // pred_check_branch
          %142 = sbr.rel (%p140) target = $region28
        $region27: #{conv1d_pallas.1} parent=23 // pred_region
          %p143 = scmp.lt.s32.totalorder %s14, 1
          %s144 = scalar_select %p143, %s14, 1
          %s145 = smul.addr %s144, 2
          %s146 = smul.addr %s145, 2
          %s147 = scalar_lea.vmem %s0, %s146
        $region28: #{conv1d_pallas.1} parent=23 // pred_fallthru
          _
      $region24: #{conv1d_pallas.1} parent=5 // pred_fallthru
        _
      %p148 = scmp.le.s32.totalorder 1, %s14
      %p149 = scmp.lt.s32.totalorder %s14, 3
      %p150 = pnand %p148, %p149
      %p151 = pneg %p150
      // Predicated region
      $region29: #{conv1d_pallas.1} parent=5 // pred_check
        _
      $region30: #{conv1d_pallas.1} parent=5 // pred_check_branch
        %153 = sbr.rel (%p150) target = $region32
      $region31: #{conv1d_pallas.1} parent=5 // pred_region
        %s154 = ssub.s32 %s14, 1
        // Predicated region
        $region33: #{conv1d_pallas.1} parent=31 // pred_check
          %p155 = pneg %p61
        $region34: #{conv1d_pallas.1} parent=31 // pred_check_branch
          %157 = sbr.rel (%p155) target = $region36
        $region35: #{conv1d_pallas.1} parent=31 // pred_region
          %159 = dma.done [#allocation5], 16
        $region36: #{conv1d_pallas.1} parent=31 // pred_fallthru
          _
        %160 = sfence
        %p161 = scmp.lt.s32.totalorder %s19, 1
        %s162 = scalar_select %p161, %s19, 1
        %s163 = smul.addr %s162, 2
        %s164 = smul.addr %s163, 2
        %s165 = scalar_lea.vmem %s0, %s164
        %p166 = pneg %p40
        %p167 = pneg %p37
        %p168 = pneg %p61
        %p169 = pneg %p58
        %p170 = pneg %p82
        %p171 = pneg %p79
        %p172 = pneg %p108
        %p173 = pneg %p105
        %s174 = sand.u32 %s95, 1
        %s175 = scalar_lea.sflag [#allocation4], %s174
        %s176 = sand.u32 %s95, 1
        %s177 = scalar_lea.vmem [#allocation6], %s176
        %p178 = scmp.lt.s32.totalorder %s19, 1
        %s179 = scalar_select %p178, %s19, 1
        %s180 = smul.addr %s179, 2
        %s181 = smul.addr %s180, 2
        %s182 = scalar_lea.vmem %s0, %s181
        %v183 = vld [vmem:[%s182] sm:$0x1]
        %s184 = sld [smem:[#allocation3]]
        %v185 = vstv %s184
        %v186 = vmul.f32 %v185, %v183
        %v187 = vadd.f32 %v186, 0.0
        %v188 = vld [vmem:[%s182 + $0x1] sm:$0x1]
        %s189 = sld [smem:[#allocation3 + $0x1]]
        %v190 = vstv %s189
        %v191 = vmul.f32 %v190, %v188
        %v192 = vadd.f32 %v187, %v191
        %s193 = sld [smem:[#allocation3 + $0x2]]
        %v194 = vstv %s193
        %v195 = vmul.f32 %v194, %v183
        %197 = vrot.lane.b32.xlu0 %v195, 127
        %v198 = vpop.permute.xlu0 %197
        %v200 = vadd.f32 %v192, %v198
        %s201 = scalar_lea.vmem %s182, 2
        %v202 = vld [vmem:[%s201] sm:$0x1]
        %s203 = sld [smem:[#allocation3 + $0x3]]
        %v204 = vstv %s203
        %v205 = vmul.f32 %v204, %v202
        %v206 = vadd.f32 %v200, %v205
        %v207 = vld [vmem:[%s201 + $0x1] sm:$0x1]
        %s208 = sld [smem:[#allocation3 + $0x4]]
        %v209 = vstv %s208
        %v210 = vmul.f32 %v209, %v207
        %v211 = vadd.f32 %v206, %v210
        %s212 = sld [smem:[#allocation3 + $0x5]]
        %v213 = vstv %s212
        %v214 = vmul.f32 %v213, %v202
        %216 = vrot.lane.b32.xlu0 %v214, 127
        %v217 = vpop.permute.xlu0 %216
        %v219 = vadd.f32 %v211, %v217
        %s220 = sld [smem:[#allocation2]]
        %v221 = vstv %s220
        %v222 = vadd.f32 %v219, %v221
        %vm223 = vcmask 24576
        %224 = vst.msk [vmem:[%s177] sm:$0x1] %vm223, %v222
        %s225 = sand.u32 %s95, 1
        %s226 = scalar_lea.sflag [#allocation4], %s225
        %s227 = sand.u32 %s95, 1
        %s228 = scalar_lea.vmem [#allocation6], %s227
        // Predicated region
        $region37: #{conv1d_pallas.1} parent=31 // pred_check
          %p229 = pneg %p105
        $region38: #{conv1d_pallas.1} parent=31 // pred_check_branch
          %231 = sbr.rel (%p229) target = $region40
        $region39: #{conv1d_pallas.1} parent=31 // pred_region
          %233 = vsyncadd %s226, 0
          %s234 = scalar_lea.hbm %s3, %s19
          %s236 = sshll.u32 %s228, 4
          %s237 = int_to_ptr.vmem [resolvable:$true] %s236
          %s238 = sshll.u32 %s234, 4
          %s239 = int_to_ptr.hbm [resolvable:$true] %s238
          %241 = dma.vmem_to_hbm [thread:$0]  %s237, 16, %s239, %s226
        $region40: #{conv1d_pallas.1} parent=31 // pred_fallthru
          _
      $region32: #{conv1d_pallas.1} parent=5 // pred_fallthru
        _
      %p242 = scmp.le.s32.totalorder 2, %s14
      // Predicated region
      $region41: #{conv1d_pallas.1} parent=5 // pred_check
        %p243 = pneg %p242
      $region42: #{conv1d_pallas.1} parent=5 // pred_check_branch
        %245 = sbr.rel (%p243) target = $region44
      $region43: #{conv1d_pallas.1} parent=5 // pred_region
        %s246 = ssub.s32 %s14, 2
        // Predicated region
        $region45: #{conv1d_pallas.1} parent=43 // pred_check
          %p247 = pneg %p111
        $region46: #{conv1d_pallas.1} parent=43 // pred_check_branch
          %249 = sbr.rel (%p247) target = $region48
        $region47: #{conv1d_pallas.1} parent=43 // pred_region
          %s250 = sand.u32 %s96, 1
          %s251 = scalar_lea.sflag [#allocation4], %s250
          %s252 = sand.u32 %s96, 1
          %s253 = scalar_lea.vmem [#allocation6], %s252
          %255 = dma.done %s251, 16
        $region48: #{conv1d_pallas.1} parent=43 // pred_fallthru
          _
      $region44: #{conv1d_pallas.1} parent=5 // pred_fallthru
        _
    $region6: #{conv1d_pallas.1} parent=1 // loop_footer
      %s18 = sadd.s32 1, %s14
    $region7: #{conv1d_pallas.1} parent=1 // loop_footer_branch
      %13 = sbr.rel target = $region3
    $region8: #{conv1d_pallas.1} parent=1 // loop_exit
      _
    %256 = vsyncpa [#allocation4], 1
    %s257 = scalar_lea.sflag [#allocation4], 1
    %258 = vsyncpa %s257, 1
    %259 = vsyncpa [#allocation5], 1
    %s260 = scalar_lea.sflag [#allocation5], 1
    %261 = vsyncpa %s260, 1

</llo_original>
